<compile_context>
chip_gen: v7x
topology: tpu7x:2x2x1
jax: 0.10.0
libtpu: 0.0.40
codegen_flags: <defaults>
</compile_context>

<pallas_src>
import functools

import jax
import jax.numpy as jnp
from jax import lax
from jax.experimental import pallas as pl
from jax.experimental.pallas import tpu as pltpu


def _center_shift_kernel(anno_ref, feat_ref, o_ref, *, stride, h, w, tc):
    """Shift one (tc, H, W) channel tile of batch element n = program_id(0)."""
    n = pl.program_id(0)
    inv_s = 1.0 / stride

    # Per-batch box (x, y, bw, bh) -> sub-pixel shift (dx, dy).  Scalars are
    # read from SMEM and broadcast immediately so all f32 math is vector ops.
    x0 = anno_ref[n, 0]
    y0 = anno_ref[n, 1]
    bw = anno_ref[n, 2]
    bh = anno_ref[n, 3]

    # Column (x) interpolation matrix, built pre-transposed: A_xT[x_in, i_out].
    xi_in = lax.broadcasted_iota(jnp.int32, (w, w), 0).astype(jnp.float32)
    xi_out = lax.broadcasted_iota(jnp.int32, (w, w), 1).astype(jnp.float32)
    dx = (jnp.full((w, w), x0) + jnp.full((w, w), bw) * 0.5) * inv_s - 0.5 * w
    ax_t = jnp.maximum(0.0, 1.0 - jnp.abs(xi_out + dx - xi_in))      # (W, W)

    # Row (y) interpolation matrix: A_y[j_out, y_in].
    yj_out = lax.broadcasted_iota(jnp.int32, (h, h), 0).astype(jnp.float32)
    yj_in = lax.broadcasted_iota(jnp.int32, (h, h), 1).astype(jnp.float32)
    dy = (jnp.full((h, h), y0) + jnp.full((h, h), bh) * 0.5) * inv_s - 0.5 * h
    ay = jnp.maximum(0.0, 1.0 - jnp.abs(yj_out + dy - yj_in))        # (H, H)

    # Two small MXU matmuls per channel: out[c] = A_y @ feat[c] @ A_xT.
    for c in range(tc):  # tc is small and static -> cheap unroll
        g = feat_ref[c].astype(jnp.float32)                          # (H, W)
        t = jnp.dot(ay, g, preferred_element_type=jnp.float32)       # (H, W)
        o = jnp.dot(t, ax_t, preferred_element_type=jnp.float32)     # (H, W)
        o_ref[c] = o.astype(o_ref.dtype)


def center_shift_features(feat, anno, feature_stride):
    """JAX/Pallas equivalent of CenterShiftFeatures(feature_stride)(feat, anno)."""
    n, c, h, w = feat.shape
    anno = jnp.asarray(anno, jnp.float32).reshape(-1, 4)

    # Channel tile: largest divisor of C up to 8 -> bounded static unroll,
    # tiny VMEM footprint (4 buffers x tc*H*W*4 B).
    tc = 1
    for cand in range(min(c, 8), 0, -1):
        if c % cand == 0:
            tc = cand
            break

    kernel = functools.partial(
        _center_shift_kernel, stride=float(feature_stride), h=h, w=w, tc=tc)

    return pl.pallas_call(
        kernel,
        out_shape=jax.ShapeDtypeStruct((n, c, h, w), feat.dtype),
        grid=(n, c // tc),
        in_specs=[
            pl.BlockSpec(memory_space=pltpu.MemorySpace.SMEM),            # anno
            pl.BlockSpec((None, tc, h, w), lambda b, k: (b, k, 0, 0)),    # feat
        ],
        out_specs=pl.BlockSpec((None, tc, h, w), lambda b, k: (b, k, 0, 0)),
        compiler_params=pltpu.CompilerParams(
            dimension_semantics=("parallel", "parallel")),
    )(anno, feat)


def _reference(feat, anno, feature_stride):
    """Pure-JAX gather-based bilinear reference (independent of the kernel math)."""
    n, c, h, w = feat.shape
    anno = jnp.asarray(anno, jnp.float32).reshape(-1, 4)
    cx = (anno[:, 0] + 0.5 * anno[:, 2]) / feature_stride
    cy = (anno[:, 1] + 0.5 * anno[:, 3]) / feature_stride
    dx = cx - 0.5 * w
    dy = cy - 0.5 * h
    cols = jnp.arange(w, dtype=jnp.float32)
    rows = jnp.arange(h, dtype=jnp.float32)
    outs = []
    for b in range(n):
        ix = cols + dx[b]
        iy = rows + dy[b]
        x0 = jnp.floor(ix).astype(jnp.int32)
        y0 = jnp.floor(iy).astype(jnp.int32)
        wx1 = ix - x0
        wy1 = iy - y0
        acc = jnp.zeros((c, h, w), jnp.float32)
        for oy, wy in ((y0, 1.0 - wy1), (y0 + 1, wy1)):
            for ox, wx in ((x0, 1.0 - wx1), (x0 + 1, wx1)):
                valid = (((oy >= 0) & (oy < h))[:, None]
                         & ((ox >= 0) & (ox < w))[None, :])
                yc = jnp.clip(oy, 0, h - 1)
                xc = jnp.clip(ox, 0, w - 1)
                v = feat[b][:, yc][:, :, xc]
                wgt = (wy[:, None] * wx[None, :]) * valid
                acc = acc + v.astype(jnp.float32) * wgt[None]
        outs.append(acc)
    return jnp.stack(outs).astype(feat.dtype)


if __name__ == "__main__":
    key = jax.random.PRNGKey(0)
    k_feat, k_xy, k_wh = jax.random.split(key, 3)

    feature_stride = 16.0
    feat = jax.random.normal(k_feat, (2, 4, 16, 16), dtype=jnp.float32)
    # Boxes (x, y, w, h) in image coordinates for a 256x256 image.
    anno = jnp.concatenate(
        [jax.random.uniform(k_xy, (2, 2), minval=10.0, maxval=180.0),
         jax.random.uniform(k_wh, (2, 2), minval=20.0, maxval=90.0)],
        axis=1)

    out = jax.block_until_ready(center_shift_features(feat, anno, feature_stride))
    assert out.shape == feat.shape, out.shape
    assert out.dtype == feat.dtype, out.dtype

    ref = jax.block_until_ready(_reference(feat, anno, feature_stride))
    max_err = float(jnp.max(jnp.abs(out - ref)))
    assert jnp.allclose(out, ref, atol=1e-2, rtol=1e-2), max_err

    print("KERNEL_OK")
</pallas_src>

<mosaic_0001>
module attributes {stable_mosaic.version = 11 : i64} {
  func.func @_center_shift_kernel(%arg0: i32, %arg1: i32, %arg2: memref<2x4xf32, #tpu.memory_space<smem>>, %arg3: memref<1x4x16x16xf32, #tpu.memory_space<vmem>>, %arg4: memref<1x4x16x16xf32, #tpu.memory_space<vmem>>) attributes {dimension_semantics = [#tpu.dimension_semantics<parallel>, #tpu.dimension_semantics<parallel>], iteration_bounds = array<i64: 2, 1>, scalar_prefetch = 0 : i64, scratch_operands = 0 : i64, tpu.core_type = #tpu.core_type<tc>, window_params = [{transform_indices = @transform_0, window_bounds = array<i64: 2, 4>}, {transform_indices = @transform_1, window_bounds = array<i64: 1, 4, 16, 16>}, {transform_indices = @transform_2, window_bounds = array<i64: 1, 4, 16, 16>}]} {
    %0 = arith.index_cast %arg0 : i32 to index
    %c0 = arith.constant 0 : index
    %1 = memref.load %arg2[%0, %c0] : memref<2x4xf32, #tpu.memory_space<smem>>
    %2 = arith.index_cast %arg0 : i32 to index
    %c1 = arith.constant 1 : index
    %3 = memref.load %arg2[%2, %c1] : memref<2x4xf32, #tpu.memory_space<smem>>
    %4 = arith.index_cast %arg0 : i32 to index
    %c2 = arith.constant 2 : index
    %5 = memref.load %arg2[%4, %c2] : memref<2x4xf32, #tpu.memory_space<smem>>
    %6 = arith.index_cast %arg0 : i32 to index
    %c3 = arith.constant 3 : index
    %7 = memref.load %arg2[%6, %c3] : memref<2x4xf32, #tpu.memory_space<smem>>
    %8 = tpu.iota {dimensions = array<i32: 0>} : vector<16x16xi32>
    %9 = arith.sitofp %8 : vector<16x16xi32> to vector<16x16xf32>
    %10 = tpu.iota {dimensions = array<i32: 1>} : vector<16x16xi32>
    %11 = arith.sitofp %10 : vector<16x16xi32> to vector<16x16xf32>
    %12 = vector.broadcast %1 : f32 to vector<16x16xf32>
    %13 = vector.broadcast %5 : f32 to vector<16x16xf32>
    %cst = arith.constant 5.000000e-01 : f32
    %14 = vector.broadcast %cst : f32 to vector<16x16xf32>
    %15 = arith.mulf %13, %14 : vector<16x16xf32>
    %16 = arith.addf %12, %15 : vector<16x16xf32>
    %cst_0 = arith.constant 6.250000e-02 : f32
    %17 = vector.broadcast %cst_0 : f32 to vector<16x16xf32>
    %18 = arith.mulf %16, %17 : vector<16x16xf32>
    %cst_1 = arith.constant 8.000000e+00 : f32
    %19 = vector.broadcast %cst_1 : f32 to vector<16x16xf32>
    %20 = arith.subf %18, %19 : vector<16x16xf32>
    %21 = arith.addf %11, %20 : vector<16x16xf32>
    %22 = arith.subf %21, %9 : vector<16x16xf32>
    %23 = math.absf %22 : vector<16x16xf32>
    %cst_2 = arith.constant 1.000000e+00 : f32
    %24 = vector.broadcast %cst_2 : f32 to vector<16x16xf32>
    %25 = arith.subf %24, %23 : vector<16x16xf32>
    %cst_3 = arith.constant 0.000000e+00 : f32
    %26 = vector.broadcast %cst_3 : f32 to vector<16x16xf32>
    %27 = arith.maximumf %26, %25 : vector<16x16xf32>
    %28 = tpu.iota {dimensions = array<i32: 0>} : vector<16x16xi32>
    %29 = arith.sitofp %28 : vector<16x16xi32> to vector<16x16xf32>
    %30 = tpu.iota {dimensions = array<i32: 1>} : vector<16x16xi32>
    %31 = arith.sitofp %30 : vector<16x16xi32> to vector<16x16xf32>
    %32 = vector.broadcast %3 : f32 to vector<16x16xf32>
    %33 = vector.broadcast %7 : f32 to vector<16x16xf32>
    %cst_4 = arith.constant 5.000000e-01 : f32
    %34 = vector.broadcast %cst_4 : f32 to vector<16x16xf32>
    %35 = arith.mulf %33, %34 : vector<16x16xf32>
    %36 = arith.addf %32, %35 : vector<16x16xf32>
    %cst_5 = arith.constant 6.250000e-02 : f32
    %37 = vector.broadcast %cst_5 : f32 to vector<16x16xf32>
    %38 = arith.mulf %36, %37 : vector<16x16xf32>
    %cst_6 = arith.constant 8.000000e+00 : f32
    %39 = vector.broadcast %cst_6 : f32 to vector<16x16xf32>
    %40 = arith.subf %38, %39 : vector<16x16xf32>
    %41 = arith.addf %29, %40 : vector<16x16xf32>
    %42 = arith.subf %41, %31 : vector<16x16xf32>
    %43 = math.absf %42 : vector<16x16xf32>
    %cst_7 = arith.constant 1.000000e+00 : f32
    %44 = vector.broadcast %cst_7 : f32 to vector<16x16xf32>
    %45 = arith.subf %44, %43 : vector<16x16xf32>
    %cst_8 = arith.constant 0.000000e+00 : f32
    %46 = vector.broadcast %cst_8 : f32 to vector<16x16xf32>
    %47 = arith.maximumf %46, %45 : vector<16x16xf32>
    %c0_9 = arith.constant 0 : index
    %c0_10 = arith.constant 0 : index
    %c0_11 = arith.constant 0 : index
    %c0_12 = arith.constant 0 : index
    %48 = vector.load %arg3[%c0_9, %c0_10, %c0_11, %c0_12] : memref<1x4x16x16xf32, #tpu.memory_space<vmem>>, vector<1x1x16x16xf32>
    %49 = vector.shape_cast %48 : vector<1x1x16x16xf32> to vector<16x16xf32>
    %cst_13 = arith.constant dense<0.000000e+00> : vector<16x16xf32>
    %50 = tpu.matmul %47, %49, %cst_13 {dimension_numbers = #tpu.dot_dimension_numbers<[1], [0], [0], [1], [0, 0, 1, 1], [], []>} : vector<16x16xf32>, vector<16x16xf32>, vector<16x16xf32> -> vector<16x16xf32>
    %cst_14 = arith.constant dense<0.000000e+00> : vector<16x16xf32>
    %51 = tpu.matmul %50, %27, %cst_14 {dimension_numbers = #tpu.dot_dimension_numbers<[1], [0], [0], [1], [0, 0, 1, 1], [], []>} : vector<16x16xf32>, vector<16x16xf32>, vector<16x16xf32> -> vector<16x16xf32>
    %c0_15 = arith.constant 0 : index
    %c0_16 = arith.constant 0 : index
    %c0_17 = arith.constant 0 : index
    %c0_18 = arith.constant 0 : index
    %52 = vector.load %arg4[%c0_15, %c0_16, %c0_17, %c0_18] : memref<1x4x16x16xf32, #tpu.memory_space<vmem>>, vector<1x1x16x16xf32>
    %53 = vector.shape_cast %52 : vector<1x1x16x16xf32> to vector<16x16xf32>
    %54 = vector.shape_cast %51 : vector<16x16xf32> to vector<1x1x16x16xf32>
    tpu.vector_store %arg4[%c0_15, %c0_16, %c0_17, %c0_18], %54 {strides = array<i32>} : memref<1x4x16x16xf32, #tpu.memory_space<vmem>>, vector<1x1x16x16xf32>,
    %c0_19 = arith.constant 0 : index
    %c1_20 = arith.constant 1 : index
    %c0_21 = arith.constant 0 : index
    %c0_22 = arith.constant 0 : index
    %55 = vector.load %arg3[%c0_19, %c1_20, %c0_21, %c0_22] : memref<1x4x16x16xf32, #tpu.memory_space<vmem>>, vector<1x1x16x16xf32>
    %56 = vector.shape_cast %55 : vector<1x1x16x16xf32> to vector<16x16xf32>
    %cst_23 = arith.constant dense<0.000000e+00> : vector<16x16xf32>
    %57 = tpu.matmul %47, %56, %cst_23 {dimension_numbers = #tpu.dot_dimension_numbers<[1], [0], [0], [1], [0, 0, 1, 1], [], []>} : vector<16x16xf32>, vector<16x16xf32>, vector<16x16xf32> -> vector<16x16xf32>
    %cst_24 = arith.constant dense<0.000000e+00> : vector<16x16xf32>
    %58 = tpu.matmul %57, %27, %cst_24 {dimension_numbers = #tpu.dot_dimension_numbers<[1], [0], [0], [1], [0, 0, 1, 1], [], []>} : vector<16x16xf32>, vector<16x16xf32>, vector<16x16xf32> -> vector<16x16xf32>
    %c0_25 = arith.constant 0 : index
    %c1_26 = arith.constant 1 : index
    %c0_27 = arith.constant 0 : index
    %c0_28 = arith.constant 0 : index
    %59 = vector.load %arg4[%c0_25, %c1_26, %c0_27, %c0_28] : memref<1x4x16x16xf32, #tpu.memory_space<vmem>>, vector<1x1x16x16xf32>
    %60 = vector.shape_cast %59 : vector<1x1x16x16xf32> to vector<16x16xf32>
    %61 = vector.shape_cast %58 : vector<16x16xf32> to vector<1x1x16x16xf32>
    tpu.vector_store %arg4[%c0_25, %c1_26, %c0_27, %c0_28], %61 {strides = array<i32>} : memref<1x4x16x16xf32, #tpu.memory_space<vmem>>, vector<1x1x16x16xf32>,
    %c0_29 = arith.constant 0 : index
    %c2_30 = arith.constant 2 : index
    %c0_31 = arith.constant 0 : index
    %c0_32 = arith.constant 0 : index
    %62 = vector.load %arg3[%c0_29, %c2_30, %c0_31, %c0_32] : memref<1x4x16x16xf32, #tpu.memory_space<vmem>>, vector<1x1x16x16xf32>
    %63 = vector.shape_cast %62 : vector<1x1x16x16xf32> to vector<16x16xf32>
    %cst_33 = arith.constant dense<0.000000e+00> : vector<16x16xf32>
    %64 = tpu.matmul %47, %63, %cst_33 {dimension_numbers = #tpu.dot_dimension_numbers<[1], [0], [0], [1], [0, 0, 1, 1], [], []>} : vector<16x16xf32>, vector<16x16xf32>, vector<16x16xf32> -> vector<16x16xf32>
    %cst_34 = arith.constant dense<0.000000e+00> : vector<16x16xf32>
    %65 = tpu.matmul %64, %27, %cst_34 {dimension_numbers = #tpu.dot_dimension_numbers<[1], [0], [0], [1], [0, 0, 1, 1], [], []>} : vector<16x16xf32>, vector<16x16xf32>, vector<16x16xf32> -> vector<16x16xf32>
    %c0_35 = arith.constant 0 : index
    %c2_36 = arith.constant 2 : index
    %c0_37 = arith.constant 0 : index
    %c0_38 = arith.constant 0 : index
    %66 = vector.load %arg4[%c0_35, %c2_36, %c0_37, %c0_38] : memref<1x4x16x16xf32, #tpu.memory_space<vmem>>, vector<1x1x16x16xf32>
    %67 = vector.shape_cast %66 : vector<1x1x16x16xf32> to vector<16x16xf32>
    %68 = vector.shape_cast %65 : vector<16x16xf32> to vector<1x1x16x16xf32>
    tpu.vector_store %arg4[%c0_35, %c2_36, %c0_37, %c0_38], %68 {strides = array<i32>} : memref<1x4x16x16xf32, #tpu.memory_space<vmem>>, vector<1x1x16x16xf32>,
    %c0_39 = arith.constant 0 : index
    %c3_40 = arith.constant 3 : index
    %c0_41 = arith.constant 0 : index
    %c0_42 = arith.constant 0 : index
    %69 = vector.load %arg3[%c0_39, %c3_40, %c0_41, %c0_42] : memref<1x4x16x16xf32, #tpu.memory_space<vmem>>, vector<1x1x16x16xf32>
    %70 = vector.shape_cast %69 : vector<1x1x16x16xf32> to vector<16x16xf32>
    %cst_43 = arith.constant dense<0.000000e+00> : vector<16x16xf32>
    %71 = tpu.matmul %47, %70, %cst_43 {dimension_numbers = #tpu.dot_dimension_numbers<[1], [0], [0], [1], [0, 0, 1, 1], [], []>} : vector<16x16xf32>, vector<16x16xf32>, vector<16x16xf32> -> vector<16x16xf32>
    %cst_44 = arith.constant dense<0.000000e+00> : vector<16x16xf32>
    %72 = tpu.matmul %71, %27, %cst_44 {dimension_numbers = #tpu.dot_dimension_numbers<[1], [0], [0], [1], [0, 0, 1, 1], [], []>} : vector<16x16xf32>, vector<16x16xf32>, vector<16x16xf32> -> vector<16x16xf32>
    %c0_45 = arith.constant 0 : index
    %c3_46 = arith.constant 3 : index
    %c0_47 = arith.constant 0 : index
    %c0_48 = arith.constant 0 : index
    %73 = vector.load %arg4[%c0_45, %c3_46, %c0_47, %c0_48] : memref<1x4x16x16xf32, #tpu.memory_space<vmem>>, vector<1x1x16x16xf32>
    %74 = vector.shape_cast %73 : vector<1x1x16x16xf32> to vector<16x16xf32>
    %75 = vector.shape_cast %72 : vector<16x16xf32> to vector<1x1x16x16xf32>
    tpu.vector_store %arg4[%c0_45, %c3_46, %c0_47, %c0_48], %75 {strides = array<i32>} : memref<1x4x16x16xf32, #tpu.memory_space<vmem>>, vector<1x1x16x16xf32>,
    return
  }
  func.func @transform_0(%arg0: i32, %arg1: i32) -> (i32, i32) {
    %c0_i32 = arith.constant 0 : i32
    %c0_i32_0 = arith.constant 0 : i32
    %c0_i32_1 = arith.constant 0 : i32
    return %c0_i32, %c0_i32_0 : i32, i32
  }
  func.func @transform_1(%arg0: i32, %arg1: i32) -> (i32, i32, i32, i32) {
    %c0_i32 = arith.constant 0 : i32
    %c0_i32_0 = arith.constant 0 : i32
    %c0_i32_1 = arith.constant 0 : i32
    return %arg0, %arg1, %c0_i32, %c0_i32_0 : i32, i32, i32, i32
  }
  func.func @transform_2(%arg0: i32, %arg1: i32) -> (i32, i32, i32, i32) {
    %c0_i32 = arith.constant 0 : i32
    %c0_i32_0 = arith.constant 0 : i32
    %c0_i32_1 = arith.constant 0 : i32
    return %arg0, %arg1, %c0_i32, %c0_i32_0 : i32, i32, i32, i32
  }
}

</mosaic_0001>

<llo_original>
// kernel: tpu_custom_call.1
$region0: #{tpu_custom_call.1}
  #allocation0 [shape = 'u32[]', space=smem, size = 0x4, offset = 0x4, fixed_abs, tag = 'smem constant byte address 0x4 - core index']
  #allocation1 [shape = 'u32[144,128]{1,0:T(1,128)}', space=vmem, size = 0x12000, scoped, tag = 'internal scratch']
  %s0 = inlined_call_operand.hbm [shape: f32[2,4], index: 0, kind: input, shape index: {}]
  %s1 = inlined_call_operand.hbm [shape: f32[2,4,16,16], index: 1, kind: input, shape index: {}]
  %s2 = inlined_call_operand.hbm [shape: f32[2,4,16,16], index: 2, kind: output, shape index: {}]
  %s3 = sld [smem:[#allocation0]]
  $region49: #{tpu_custom_call.1} parent=0
    _
  %s5 = ssub.s32 1, %s3
  %s6 = scalar_select 0, %s5, %s3
  $region1: #{tpu_custom_call.1} parent=0
    #allocation2 [shape = 'u8[1024]{0}', space=smem, size = 0x400, scoped, tag = 'input window, operand 0, single buffered']
    #allocation3 [shape = 's32[2]{0}', space=sflag, size = 0x8, scoped, tag = 'scoped memory for tpu_custom_call.1']
    #allocation4 [shape = 's32[2]{0}', space=sflag, size = 0x8, scoped, tag = 'scoped memory for tpu_custom_call.1']
    #allocation5 [shape = 's32[2]{0}', space=sflag, size = 0x8, scoped, tag = 'scoped memory for tpu_custom_call.1']
    #allocation6 [shape = 'u8[65536]{0}', space=vmem, size = 0x10000, scoped, tag = 'input window, operand 1']
    #allocation7 [shape = 'u8[65536]{0}', space=vmem, size = 0x10000, scoped, tag = 'output window, operand 0']
    %7 = vsyncpa [#allocation5], 0
    %8 = vsyncpa [#allocation3], 0
    %s9 = scalar_lea.sflag [#allocation3], 1
    %10 = vsyncpa %s9, 0
    %11 = vsyncpa [#allocation4], 0
    %s12 = scalar_lea.sflag [#allocation4], 1
    %13 = vsyncpa %s12, 0
    loop: start=0, step=1, limit=4
    $region2: #{tpu_custom_call.1} parent=1 // loop_pre_header
      _
    $region3: #{tpu_custom_call.1} parent=1 // loop_header
      %s15 = sphi 0, %s19
      %p16 = scmp.ge.s32.totalorder %s15, 4
      %s22 = sphi 0, %s34
      %s23 = sphi 0, %s30
      %s24 = sphi 0, %s22
      %s25 = sphi 0, %s23
      %s26 = sphi 0, %s24
      %s27 = sphi 0, %s25
      %s35 = sphi 0, %s35
      %s37 = sphi 0, %s35
      %s38 = sphi 0, %s37
      %s52 = sphi 0, %s38
      %s60 = sphi 0, %s62
      %s63 = sphi 0, %s60
      %s64 = sphi 0, %s63
      %s80 = sphi 0, %s64
      %s88 = sphi 0, %s90
      %s91 = sphi 0, %s88
      %s92 = sphi 0, %s91
      %s108 = sphi 0, %s92
    $region4: #{tpu_custom_call.1} parent=1 // loop_header_branch
      %18 = sbr.rel (%p16) target = $region8
    $region5: #{tpu_custom_call.1} parent=1 // loop_body
      %s20 = ssub.s32 %s15, 1
      %s21 = ssub.s32 %s15, 2
      %s28 = sadd.s32 1, %s23
      %p29 = scmp.ge.s32.totalorder %s28, 1
      %s30 = scalar_select %p29, 0, %s28
      %s31 = sadd.s32 1, %s22
      %s32 = scalar_select %p29, %s31, %s22
      %p33 = scmp.ge.s32.totalorder %s32, 2
      %s34 = scalar_select %p33, 0, %s32
      %s36 = sadd.s32 %s35, 1
      %p39 = scmp.eq.s32.totalorder %s15, 1
      %p40 = scmp.ne.s32.totalorder %s35, %s37
      %p41 = scmp.eq.s32.totalorder %s15, 0
      %p42 = por %p40, %p41
      %p43 = scmp.ne.s32.totalorder %s35, %s37
      %p44 = scmp.eq.s32.totalorder %s20, 1
      %p45 = por %p43, %p44
      %p46 = scmp.ne.s32.totalorder %s37, %s38
      %p47 = scmp.eq.s32.totalorder %s20, 0
      %p48 = por %p46, %p47
      %p49 = scmp.ne.s32.totalorder %s37, %s38
      %p50 = scmp.eq.s32.totalorder %s21, 1
      %p51 = por %p49, %p50
      %p53 = scmp.ne.s32.totalorder %s38, %s52
      %p54 = scmp.eq.s32.totalorder %s21, 0
      %p55 = por %p53, %p54
      %s56 = ssub.s32 %s22, %s34
      %s57 = ssub.s32 %s23, %s30
      %s58 = sor.u32 %s56, %s57
      %p59 = scmp.eq.s32.totalorder %s58, 0
      %s61 = sadd.s32 %s60, 1
      %s62 = scalar_select %p59, %s60, %s61
      %p65 = pneg %p59
      %p66 = scmp.eq.s32.totalorder %s15, 1
      %p67 = por %p65, %p66
      %p68 = scmp.ne.s32.totalorder %s60, %s63
      %p69 = scmp.eq.s32.totalorder %s15, 0
      %p70 = por %p68, %p69
      %p71 = scmp.ne.s32.totalorder %s60, %s63
      %p72 = scmp.eq.s32.totalorder %s20, 1
      %p73 = por %p71, %p72
      %p74 = scmp.ne.s32.totalorder %s63, %s64
      %p75 = scmp.eq.s32.totalorder %s20, 0
      %p76 = por %p74, %p75
      %p77 = scmp.ne.s32.totalorder %s63, %s64
      %p78 = scmp.eq.s32.totalorder %s21, 1
      %p79 = por %p77, %p78
      %p81 = scmp.ne.s32.totalorder %s64, %s80
      %p82 = scmp.eq.s32.totalorder %s21, 0
      %p83 = por %p81, %p82
      %s84 = ssub.s32 %s22, %s34
      %s85 = ssub.s32 %s23, %s30
      %s86 = sor.u32 %s84, %s85
      %p87 = scmp.eq.s32.totalorder %s86, 0
      %s89 = sadd.s32 %s88, 1
      %s90 = scalar_select %p87, %s88, %s89
      %p93 = pneg %p87
      %p94 = scmp.eq.s32.totalorder %s15, 1
      %p95 = por %p93, %p94
      %p96 = scmp.ne.s32.totalorder %s88, %s91
      %p97 = scmp.eq.s32.totalorder %s15, 0
      %p98 = por %p96, %p97
      %p99 = scmp.ne.s32.totalorder %s88, %s91
      %p100 = scmp.eq.s32.totalorder %s20, 1
      %p101 = por %p99, %p100
      %p102 = scmp.ne.s32.totalorder %s91, %s92
      %p103 = scmp.eq.s32.totalorder %s20, 0
      %p104 = por %p102, %p103
      %p105 = scmp.ne.s32.totalorder %s91, %s92
      %p106 = scmp.eq.s32.totalorder %s21, 1
      %p107 = por %p105, %p106
      %p109 = scmp.ne.s32.totalorder %s92, %s108
      %p110 = scmp.eq.s32.totalorder %s21, 0
      %p111 = por %p109, %p110
      %p112 = scmp.le.s32.totalorder 1, %s15
      %p113 = scmp.lt.s32.totalorder %s15, 3
      %p114 = pnand %p112, %p113
      %p115 = pneg %p114
      // Predicated region
      $region9: #{tpu_custom_call.1} parent=5 // pred_check
        _
      $region10: #{tpu_custom_call.1} parent=5 // pred_check_branch
        %117 = sbr.rel (%p114) target = $region12
      $region11: #{tpu_custom_call.1} parent=5 // pred_region
        %s118 = ssub.s32 %s15, 1
        // Predicated region
        $region13: #{tpu_custom_call.1} parent=11 // pred_check
          %p119 = pneg %p48
        $region14: #{tpu_custom_call.1} parent=11 // pred_check_branch
          %121 = sbr.rel (%p119) target = $region16
        $region15: #{tpu_custom_call.1} parent=11 // pred_region
          %s123 = ssub.s32 32, 32
          %124 = vsyncadd [#allocation5], %s123
          %127 = dma.hbm_to_smem %s0, 32, [#allocation2], [#allocation5]
        $region16: #{tpu_custom_call.1} parent=11 // pred_fallthru
          _
      $region12: #{tpu_custom_call.1} parent=5 // pred_fallthru
        _
      %p128 = scmp.lt.s32.totalorder %s15, 2
      // Predicated region
      $region17: #{tpu_custom_call.1} parent=5 // pred_check
        %p129 = pneg %p128
      $region18: #{tpu_custom_call.1} parent=5 // pred_check_branch
        %131 = sbr.rel (%p129) target = $region20
      $region19: #{tpu_custom_call.1} parent=5 // pred_region
        // Predicated region
        $region21: #{tpu_custom_call.1} parent=19 // pred_check
          %p132 = pneg %p70
        $region22: #{tpu_custom_call.1} parent=19 // pred_check_branch
          %134 = sbr.rel (%p132) target = $region24
        $region23: #{tpu_custom_call.1} parent=19 // pred_region
          %s135 = sand.u32 %s60, 1
          %s136 = scalar_lea.sflag [#allocation3], %s135
          %s137 = sand.u32 %s60, 1
          %s138 = smul.addr %s137, 64
          %s139 = scalar_lea.vmem [#allocation6], %s138
          %s140 = smul.u32 4, %s23
          %s142 = ssub.s32 1024, 1024
          %143 = vsyncadd %s136, %s142
          %s144 = smul.addr %s140, 2
          %s145 = smul.addr %s22, 8
          %s146 = sadd.s32 %s144, %s145
          %s147 = smul.addr %s146, 128
          %s148 = scalar_lea.hbm %s1, %s147
          %s149 = sshll.u32 %s139, 4
          %s150 = int_to_ptr.vmem [resolvable:$true] %s149
          %155 = dma.hbm_to_vmem [thread:$0]  %s148, 1024, %s150, %s136, 128, 128, 8
        $region24: #{tpu_custom_call.1} parent=19 // pred_fallthru
          _
      $region20: #{tpu_custom_call.1} parent=5 // pred_fallthru
        _
      %p156 = scmp.le.s32.totalorder 1, %s15
      %p157 = scmp.lt.s32.totalorder %s15, 3
      %p158 = pnand %p156, %p157
      %p159 = pneg %p158
      // Predicated region
      $region25: #{tpu_custom_call.1} parent=5 // pred_check
        _
      $region26: #{tpu_custom_call.1} parent=5 // pred_check_branch
        %161 = sbr.rel (%p158) target = $region28
      $region27: #{tpu_custom_call.1} parent=5 // pred_region
        %s162 = ssub.s32 %s15, 1
        // Predicated region
        $region29: #{tpu_custom_call.1} parent=27 // pred_check
          %p163 = pneg %p48
        $region30: #{tpu_custom_call.1} parent=27 // pred_check_branch
          %165 = sbr.rel (%p163) target = $region32
        $region31: #{tpu_custom_call.1} parent=27 // pred_region
          %166 = dma.done [#allocation5], 32
        $region32: #{tpu_custom_call.1} parent=27 // pred_fallthru
          _
        %s167 = sand.u32 %s63, 1
        %s168 = scalar_lea.sflag [#allocation3], %s167
        %s169 = sand.u32 %s63, 1
        %s170 = smul.addr %s169, 64
        %s171 = scalar_lea.vmem [#allocation6], %s170
        // Predicated region
        $region33: #{tpu_custom_call.1} parent=27 // pred_check
          %p172 = pneg %p76
        $region34: #{tpu_custom_call.1} parent=27 // pred_check_branch
          %174 = sbr.rel (%p172) target = $region36
        $region35: #{tpu_custom_call.1} parent=27 // pred_region
          %175 = dma.done %s168, 1024
        $region36: #{tpu_custom_call.1} parent=27 // pred_fallthru
          _
        %176 = sfence
        %p177 = pneg %p48
        %p178 = pneg %p45
        %s179 = sand.u32 %s63, 1
        %s180 = scalar_lea.sflag [#allocation3], %s179
        %s181 = sand.u32 %s63, 1
        %s182 = smul.addr %s181, 64
        %s183 = scalar_lea.vmem [#allocation6], %s182
        %p184 = pneg %p76
        %p185 = pneg %p73
        %p186 = pneg %p104
        %p187 = pneg %p101
        %s188 = sand.u32 %s91, 1
        %s189 = scalar_lea.sflag [#allocation4], %s188
        %s190 = sand.u32 %s91, 1
        %s191 = smul.addr %s190, 64
        %s192 = scalar_lea.vmem [#allocation7], %s191
        %s193 = smul.u32 4, %s25
        %s194 = smul.u32 4, %s25
        %s195 = smul.u32 %s24, 128
        %s196 = sld [smem:[#allocation2 + %s195]]
        %s197 = sadd.s32 %s195, 1
        %s198 = sld [smem:[#allocation2 + %s197]]
        %s199 = sadd.s32 %s195, 2
        %s200 = sld [smem:[#allocation2 + %s199]]
        %s201 = sadd.s32 %s195, 3
        %s202 = sld [smem:[#allocation2 + %s201]]
        %v203 = vlaneseq
        %v204 = vshrl.u32 %v203, 7
        %v205 = vadd.s32 %v204, 8
        %v206 = vcvt.s32.f32 %v204
        %v207 = vcvt.s32.f32 %v205
        %v208 = vlaneseq
        %v209 = vand.u32 %v208, 127
        %v210 = vcvt.s32.f32 %v209
        %v211 = vstv %s196
        %v212 = vstv %s200
        %v213 = vmul.f32 %v212, 0.5
        %v214 = vadd.f32 %v211, %v213
        %v215 = vmul.f32 %v214, 0.0625
        %v216 = vsub.f32 %v215, 8.0
        %v217 = vadd.f32 %v210, %v216
        %v218 = vsub.f32 %v217, %v206
        %v219 = vsub.f32 %v217, %v207
        %v220 = vand.u32 2147483647, %v218
        %v221 = vand.u32 2147483647, %v219
        %v222 = vsub.f32 1.0, %v220
        %v223 = vsub.f32 1.0, %v221
        %v224 = vmax.f32 %v222, 0.0
        %v225 = vmax.f32 %v223, 0.0
        %v226 = vstv %s198
        %v227 = vstv %s202
        %v228 = vmul.f32 %v227, 0.5
        %v229 = vadd.f32 %v226, %v228
        %v230 = vmul.f32 %v229, 0.0625
        %v231 = vsub.f32 %v230, 8.0
        %v232 = vadd.f32 %v206, %v231
        %v233 = vadd.f32 %v207, %v231
        %v234 = vsub.f32 %v232, %v210
        %v235 = vsub.f32 %v233, %v210
        %v236 = vand.u32 2147483647, %v234
        %v237 = vand.u32 2147483647, %v235
        %v238 = vsub.f32 1.0, %v236
        %v239 = vsub.f32 1.0, %v237
        %v240 = vmax.f32 %v238, 0.0
        %v241 = vmax.f32 %v239, 0.0
        %v242 = vld [vmem:[%s171] sm:$0xff]
        %v243 = vld [vmem:[%s171 + $0x8] sm:$0xff]
        %vm244 = vcmask 130048
        %v246 = vsel %vm244, %v240, 0
        %v249 = vsel %vm244, %v241, 0
        %251 = vmatprep.subr.mxu0 0.0
        %252 = vmatpush1.msra.mxu0 %v242
        %253 = vmatprep.subr.mxu0 0.0
        %254 = vmatpush1.msra.mxu0 %v243
        %255 = vmatprep.subr.mxu0 0.0
        %256 = vmatpush1.msra.mxu0 0.0
        %257 = vmatprep.subr.mxu0 0.0
        %258 = vmatpush1.msra.mxu0 0.0
        %259 = vmatprep.subr.mxu0 0.0
        %260 = vmatpush1.msra.mxu0 0.0
        %261 = vmatprep.subr.mxu0 0.0
        %262 = vmatpush1.msra.mxu0 0.0
        %263 = vmatprep.subr.mxu0 0.0
        %264 = vmatpush1.msra.mxu0 0.0
        %265 = vmatprep.subr.mxu0 0.0
        %266 = vmatpush1.msra.mxu0 0.0
        %267 = vmatprep.subr.mxu0 0.0
        %268 = vmatpush1.msra.mxu0 0.0
        %269 = vmatprep.subr.mxu0 0.0
        %270 = vmatpush1.msra.mxu0 0.0
        %271 = vmatprep.subr.mxu0 0.0
        %272 = vmatpush1.msra.mxu0 0.0
        %273 = vmatprep.subr.mxu0 0.0
        %274 = vmatpush1.msra.mxu0 0.0
        %275 = vmatprep.subr.mxu0 0.0
        %276 = vmatpush1.msra.mxu0 0.0
        %277 = vmatprep.subr.mxu0 0.0
        %278 = vmatpush1.msra.mxu0 0.0
        %279 = vmatprep.subr.mxu0 0.0
        %280 = vmatpush1.msra.mxu0 0.0
        %281 = vmatprep.subr.mxu0 0.0
        %282 = vmatpush1.msra.mxu0 0.0
        %283 = vmatprep.subr.mxu0 0.0
        %284 = vmatpush1.msra.mxu0 0.0
        %285 = vmatprep.subr.mxu0 0.0
        %286 = vmatpush1.msra.mxu0 0.0
        %287 = vmatprep.subr.mxu0 0.0
        %288 = vmatpush1.msra.mxu0 0.0
        %289 = vmatprep.subr.mxu0 0.0
        %290 = vmatpush1.msra.mxu0 0.0
        %291 = vmatprep.subr.mxu0 0.0
        %292 = vmatpush1.msra.mxu0 0.0
        %293 = vmatprep.subr.mxu0 0.0
        %294 = vmatpush1.msra.mxu0 0.0
        %295 = vmatprep.subr.mxu0 0.0
        %296 = vmatpush1.msra.mxu0 0.0
        %297 = vmatprep.subr.mxu0 0.0
        %298 = vmatpush1.msra.mxu0 0.0
        %299 = vmatprep.subr.mxu0 0.0
        %300 = vmatpush1.msra.mxu0 0.0
        %301 = vmatprep.subr.mxu0 0.0
        %302 = vmatpush1.msra.mxu0 0.0
        %303 = vmatprep.subr.mxu0 0.0
        %304 = vmatpush1.msra.mxu0 0.0
        %305 = vmatprep.subr.mxu0 0.0
        %306 = vmatpush1.msra.mxu0 0.0
        %307 = vmatprep.subr.mxu0 0.0
        %308 = vmatpush1.msra.mxu0 0.0
        %309 = vmatprep.subr.mxu0 0.0
        %310 = vmatpush1.msra.mxu0 0.0
        %311 = vmatprep.subr.mxu0 0.0
        %312 = vmatpush1.msra.mxu0 0.0
        %313 = vmatprep.subr.mxu0 0.0
        %314 = vmatpush1.msra.mxu0 0.0
        %315 = vmatprep.mubr.f32.mxu0 0.0
        %316 = vmatmul.mubr.f32.gmra.mrb[0].mxu0 %v246
        %v317 = vpop.f32.mrb[0].mxu0
        %v318 = vadd.f32 0.0, %v317
        %v319 = vpop.f32.mrb[0].mxu0
        %320 = vmatprep.mubr.f32.mxu0 0.0
        %321 = vmatmul.mubr.f32.gmra.mrb[0].mxu0 %v249
        %v322 = vpop.f32.mrb[0].mxu0
        %v323 = vadd.f32 0.0, %v322
        %v324 = vpop.f32.mrb[0].mxu0
        %325 = vdwg.mxu0
        %v327 = vsel %vm244, %v318, 0
        %v330 = vsel %vm244, %v323, 0
        %332 = vmatprep.subr.mxu0 0.0
        %333 = vmatpush1.msra.mxu0 %v224
        %334 = vmatprep.subr.mxu0 0.0
        %335 = vmatpush1.msra.mxu0 %v225
        %336 = vmatprep.subr.mxu0 0.0
        %337 = vmatpush1.msra.mxu0 0.0
        %338 = vmatprep.subr.mxu0 0.0
        %339 = vmatpush1.msra.mxu0 0.0
        %340 = vmatprep.subr.mxu0 0.0
        %341 = vmatpush1.msra.mxu0 0.0
        %342 = vmatprep.subr.mxu0 0.0
        %343 = vmatpush1.msra.mxu0 0.0
        %344 = vmatprep.subr.mxu0 0.0
        %345 = vmatpush1.msra.mxu0 0.0
        %346 = vmatprep.subr.mxu0 0.0
        %347 = vmatpush1.msra.mxu0 0.0
        %348 = vmatprep.subr.mxu0 0.0
        %349 = vmatpush1.msra.mxu0 0.0
        %350 = vmatprep.subr.mxu0 0.0
        %351 = vmatpush1.msra.mxu0 0.0
        %352 = vmatprep.subr.mxu0 0.0
        %353 = vmatpush1.msra.mxu0 0.0
        %354 = vmatprep.subr.mxu0 0.0
        %355 = vmatpush1.msra.mxu0 0.0
        %356 = vmatprep.subr.mxu0 0.0
        %357 = vmatpush1.msra.mxu0 0.0
        %358 = vmatprep.subr.mxu0 0.0
        %359 = vmatpush1.msra.mxu0 0.0
        %360 = vmatprep.subr.mxu0 0.0
        %361 = vmatpush1.msra.mxu0 0.0
        %362 = vmatprep.subr.mxu0 0.0
        %363 = vmatpush1.msra.mxu0 0.0
        %364 = vmatprep.subr.mxu0 0.0
        %365 = vmatpush1.msra.mxu0 0.0
        %366 = vmatprep.subr.mxu0 0.0
        %367 = vmatpush1.msra.mxu0 0.0
        %368 = vmatprep.subr.mxu0 0.0
        %369 = vmatpush1.msra.mxu0 0.0
        %370 = vmatprep.subr.mxu0 0.0
        %371 = vmatpush1.msra.mxu0 0.0
        %372 = vmatprep.subr.mxu0 0.0
        %373 = vmatpush1.msra.mxu0 0.0
        %374 = vmatprep.subr.mxu0 0.0
        %375 = vmatpush1.msra.mxu0 0.0
        %376 = vmatprep.subr.mxu0 0.0
        %377 = vmatpush1.msra.mxu0 0.0
        %378 = vmatprep.subr.mxu0 0.0
        %379 = vmatpush1.msra.mxu0 0.0
        %380 = vmatprep.subr.mxu0 0.0
        %381 = vmatpush1.msra.mxu0 0.0
        %382 = vmatprep.subr.mxu0 0.0
        %383 = vmatpush1.msra.mxu0 0.0
        %384 = vmatprep.subr.mxu0 0.0
        %385 = vmatpush1.msra.mxu0 0.0
        %386 = vmatprep.subr.mxu0 0.0
        %387 = vmatpush1.msra.mxu0 0.0
        %388 = vmatprep.subr.mxu0 0.0
        %389 = vmatpush1.msra.mxu0 0.0
        %390 = vmatprep.subr.mxu0 0.0
        %391 = vmatpush1.msra.mxu0 0.0
        %392 = vmatprep.subr.mxu0 0.0
        %393 = vmatpush1.msra.mxu0 0.0
        %394 = vmatprep.subr.mxu0 0.0
        %395 = vmatpush1.msra.mxu0 0.0
        %396 = vmatprep.mubr.f32.mxu0 0.0
        %397 = vmatmul.mubr.f32.gmra.mrb[0].mxu0 %v327
        %v398 = vpop.f32.mrb[0].mxu0
        %v399 = vadd.f32 0.0, %v398
        %v400 = vpop.f32.mrb[0].mxu0
        %401 = vmatprep.mubr.f32.mxu0 0.0
        %402 = vmatmul.mubr.f32.gmra.mrb[0].mxu0 %v330
        %v403 = vpop.f32.mrb[0].mxu0
        %v404 = vadd.f32 0.0, %v403
        %v405 = vpop.f32.mrb[0].mxu0
        %406 = vdwg.mxu0
        %407 = vst.msk [vmem:[%s192] sm:$0xff] %vm244, %v399
        %408 = vst.msk [vmem:[%s192 + $0x8] sm:$0xff] %vm244, %v404
        %s409 = scalar_lea.vmem %s171, 16 [#allocation6]
        %v410 = vld [vmem:[%s409] sm:$0xff]
        %v411 = vld [vmem:[%s409 + $0x8] sm:$0xff]
        %412 = vmatprep.subr.mxu0 0.0
        %413 = vmatpush1.msra.mxu0 %v410
        %414 = vmatprep.subr.mxu0 0.0
        %415 = vmatpush1.msra.mxu0 %v411
        %416 = vmatprep.subr.mxu0 0.0
        %417 = vmatpush1.msra.mxu0 0.0
        %418 = vmatprep.subr.mxu0 0.0
        %419 = vmatpush1.msra.mxu0 0.0
        %420 = vmatprep.subr.mxu0 0.0
        %421 = vmatpush1.msra.mxu0 0.0
        %422 = vmatprep.subr.mxu0 0.0
        %423 = vmatpush1.msra.mxu0 0.0
        %424 = vmatprep.subr.mxu0 0.0
        %425 = vmatpush1.msra.mxu0 0.0
        %426 = vmatprep.subr.mxu0 0.0
        %427 = vmatpush1.msra.mxu0 0.0
        %428 = vmatprep.subr.mxu0 0.0
        %429 = vmatpush1.msra.mxu0 0.0
        %430 = vmatprep.subr.mxu0 0.0
        %431 = vmatpush1.msra.mxu0 0.0
        %432 = vmatprep.subr.mxu0 0.0
        %433 = vmatpush1.msra.mxu0 0.0
        %434 = vmatprep.subr.mxu0 0.0
        %435 = vmatpush1.msra.mxu0 0.0
        %436 = vmatprep.subr.mxu0 0.0
        %437 = vmatpush1.msra.mxu0 0.0
        %438 = vmatprep.subr.mxu0 0.0
        %439 = vmatpush1.msra.mxu0 0.0
        %440 = vmatprep.subr.mxu0 0.0
        %441 = vmatpush1.msra.mxu0 0.0
        %442 = vmatprep.subr.mxu0 0.0
        %443 = vmatpush1.msra.mxu0 0.0
        %444 = vmatprep.subr.mxu0 0.0
        %445 = vmatpush1.msra.mxu0 0.0
        %446 = vmatprep.subr.mxu0 0.0
        %447 = vmatpush1.msra.mxu0 0.0
        %448 = vmatprep.subr.mxu0 0.0
        %449 = vmatpush1.msra.mxu0 0.0
        %450 = vmatprep.subr.mxu0 0.0
        %451 = vmatpush1.msra.mxu0 0.0
        %452 = vmatprep.subr.mxu0 0.0
        %453 = vmatpush1.msra.mxu0 0.0
        %454 = vmatprep.subr.mxu0 0.0
        %455 = vmatpush1.msra.mxu0 0.0
        %456 = vmatprep.subr.mxu0 0.0
        %457 = vmatpush1.msra.mxu0 0.0
        %458 = vmatprep.subr.mxu0 0.0
        %459 = vmatpush1.msra.mxu0 0.0
        %460 = vmatprep.subr.mxu0 0.0
        %461 = vmatpush1.msra.mxu0 0.0
        %462 = vmatprep.subr.mxu0 0.0
        %463 = vmatpush1.msra.mxu0 0.0
        %464 = vmatprep.subr.mxu0 0.0
        %465 = vmatpush1.msra.mxu0 0.0
        %466 = vmatprep.subr.mxu0 0.0
        %467 = vmatpush1.msra.mxu0 0.0
        %468 = vmatprep.subr.mxu0 0.0
        %469 = vmatpush1.msra.mxu0 0.0
        %470 = vmatprep.subr.mxu0 0.0
        %471 = vmatpush1.msra.mxu0 0.0
        %472 = vmatprep.subr.mxu0 0.0
        %473 = vmatpush1.msra.mxu0 0.0
        %474 = vmatprep.subr.mxu0 0.0
        %475 = vmatpush1.msra.mxu0 0.0
        %476 = vmatprep.mubr.f32.mxu0 0.0
        %477 = vmatmul.mubr.f32.gmra.mrb[0].mxu0 %v246
        %v478 = vpop.f32.mrb[0].mxu0
        %v479 = vadd.f32 0.0, %v478
        %v480 = vpop.f32.mrb[0].mxu0
        %481 = vmatprep.mubr.f32.mxu0 0.0
        %482 = vmatmul.mubr.f32.gmra.mrb[0].mxu0 %v249
        %v483 = vpop.f32.mrb[0].mxu0
        %v484 = vadd.f32 0.0, %v483
        %v485 = vpop.f32.mrb[0].mxu0
        %486 = vdwg.mxu0
        %v488 = vsel %vm244, %v479, 0
        %v491 = vsel %vm244, %v484, 0
        %493 = vmatprep.subr.mxu0 0.0
        %494 = vmatpush1.msra.mxu0 %v224
        %495 = vmatprep.subr.mxu0 0.0
        %496 = vmatpush1.msra.mxu0 %v225
        %497 = vmatprep.subr.mxu0 0.0
        %498 = vmatpush1.msra.mxu0 0.0
        %499 = vmatprep.subr.mxu0 0.0
        %500 = vmatpush1.msra.mxu0 0.0
        %501 = vmatprep.subr.mxu0 0.0
        %502 = vmatpush1.msra.mxu0 0.0
        %503 = vmatprep.subr.mxu0 0.0
        %504 = vmatpush1.msra.mxu0 0.0
        %505 = vmatprep.subr.mxu0 0.0
        %506 = vmatpush1.msra.mxu0 0.0
        %507 = vmatprep.subr.mxu0 0.0
        %508 = vmatpush1.msra.mxu0 0.0
        %509 = vmatprep.subr.mxu0 0.0
        %510 = vmatpush1.msra.mxu0 0.0
        %511 = vmatprep.subr.mxu0 0.0
        %512 = vmatpush1.msra.mxu0 0.0
        %513 = vmatprep.subr.mxu0 0.0
        %514 = vmatpush1.msra.mxu0 0.0
        %515 = vmatprep.subr.mxu0 0.0
        %516 = vmatpush1.msra.mxu0 0.0
        %517 = vmatprep.subr.mxu0 0.0
        %518 = vmatpush1.msra.mxu0 0.0
        %519 = vmatprep.subr.mxu0 0.0
        %520 = vmatpush1.msra.mxu0 0.0
        %521 = vmatprep.subr.mxu0 0.0
        %522 = vmatpush1.msra.mxu0 0.0
        %523 = vmatprep.subr.mxu0 0.0
        %524 = vmatpush1.msra.mxu0 0.0
        %525 = vmatprep.subr.mxu0 0.0
        %526 = vmatpush1.msra.mxu0 0.0
        %527 = vmatprep.subr.mxu0 0.0
        %528 = vmatpush1.msra.mxu0 0.0
        %529 = vmatprep.subr.mxu0 0.0
        %530 = vmatpush1.msra.mxu0 0.0
        %531 = vmatprep.subr.mxu0 0.0
        %532 = vmatpush1.msra.mxu0 0.0
        %533 = vmatprep.subr.mxu0 0.0
        %534 = vmatpush1.msra.mxu0 0.0
        %535 = vmatprep.subr.mxu0 0.0
        %536 = vmatpush1.msra.mxu0 0.0
        %537 = vmatprep.subr.mxu0 0.0
        %538 = vmatpush1.msra.mxu0 0.0
        %539 = vmatprep.subr.mxu0 0.0
        %540 = vmatpush1.msra.mxu0 0.0
        %541 = vmatprep.subr.mxu0 0.0
        %542 = vmatpush1.msra.mxu0 0.0
        %543 = vmatprep.subr.mxu0 0.0
        %544 = vmatpush1.msra.mxu0 0.0
        %545 = vmatprep.subr.mxu0 0.0
        %546 = vmatpush1.msra.mxu0 0.0
        %547 = vmatprep.subr.mxu0 0.0
        %548 = vmatpush1.msra.mxu0 0.0
        %549 = vmatprep.subr.mxu0 0.0
        %550 = vmatpush1.msra.mxu0 0.0
        %551 = vmatprep.subr.mxu0 0.0
        %552 = vmatpush1.msra.mxu0 0.0
        %553 = vmatprep.subr.mxu0 0.0
        %554 = vmatpush1.msra.mxu0 0.0
        %555 = vmatprep.subr.mxu0 0.0
        %556 = vmatpush1.msra.mxu0 0.0
        %557 = vmatprep.mubr.f32.mxu0 0.0
        %558 = vmatmul.mubr.f32.gmra.mrb[0].mxu0 %v488
        %v559 = vpop.f32.mrb[0].mxu0
        %v560 = vadd.f32 0.0, %v559
        %v561 = vpop.f32.mrb[0].mxu0
        %562 = vmatprep.mubr.f32.mxu0 0.0
        %563 = vmatmul.mubr.f32.gmra.mrb[0].mxu0 %v491
        %v564 = vpop.f32.mrb[0].mxu0
        %v565 = vadd.f32 0.0, %v564
        %v566 = vpop.f32.mrb[0].mxu0
        %567 = vdwg.mxu0
        %s568 = scalar_lea.vmem %s192, 16 [#allocation7]
        %569 = vst.msk [vmem:[%s568] sm:$0xff] %vm244, %v560
        %570 = vst.msk [vmem:[%s568 + $0x8] sm:$0xff] %vm244, %v565
        %s571 = scalar_lea.vmem %s171, 32 [#allocation6]
        %v572 = vld [vmem:[%s571] sm:$0xff]
        %v573 = vld [vmem:[%s571 + $0x8] sm:$0xff]
        %574 = vmatprep.subr.mxu0 0.0
        %575 = vmatpush1.msra.mxu0 %v572
        %576 = vmatprep.subr.mxu0 0.0
        %577 = vmatpush1.msra.mxu0 %v573
        %578 = vmatprep.subr.mxu0 0.0
        %579 = vmatpush1.msra.mxu0 0.0
        %580 = vmatprep.subr.mxu0 0.0
        %581 = vmatpush1.msra.mxu0 0.0
        %582 = vmatprep.subr.mxu0 0.0
        %583 = vmatpush1.msra.mxu0 0.0
        %584 = vmatprep.subr.mxu0 0.0
        %585 = vmatpush1.msra.mxu0 0.0
        %586 = vmatprep.subr.mxu0 0.0
        %587 = vmatpush1.msra.mxu0 0.0
        %588 = vmatprep.subr.mxu0 0.0
        %589 = vmatpush1.msra.mxu0 0.0
        %590 = vmatprep.subr.mxu0 0.0
        %591 = vmatpush1.msra.mxu0 0.0
        %592 = vmatprep.subr.mxu0 0.0
        %593 = vmatpush1.msra.mxu0 0.0
        %594 = vmatprep.subr.mxu0 0.0
        %595 = vmatpush1.msra.mxu0 0.0
        %596 = vmatprep.subr.mxu0 0.0
        %597 = vmatpush1.msra.mxu0 0.0
        %598 = vmatprep.subr.mxu0 0.0
        %599 = vmatpush1.msra.mxu0 0.0
        %600 = vmatprep.subr.mxu0 0.0
        %601 = vmatpush1.msra.mxu0 0.0
        %602 = vmatprep.subr.mxu0 0.0
        %603 = vmatpush1.msra.mxu0 0.0
        %604 = vmatprep.subr.mxu0 0.0
        %605 = vmatpush1.msra.mxu0 0.0
        %606 = vmatprep.subr.mxu0 0.0
        %607 = vmatpush1.msra.mxu0 0.0
        %608 = vmatprep.subr.mxu0 0.0
        %609 = vmatpush1.msra.mxu0 0.0
        %610 = vmatprep.subr.mxu0 0.0
        %611 = vmatpush1.msra.mxu0 0.0
        %612 = vmatprep.subr.mxu0 0.0
        %613 = vmatpush1.msra.mxu0 0.0
        %614 = vmatprep.subr.mxu0 0.0
        %615 = vmatpush1.msra.mxu0 0.0
        %616 = vmatprep.subr.mxu0 0.0
        %617 = vmatpush1.msra.mxu0 0.0
        %618 = vmatprep.subr.mxu0 0.0
        %619 = vmatpush1.msra.mxu0 0.0
        %620 = vmatprep.subr.mxu0 0.0
        %621 = vmatpush1.msra.mxu0 0.0
        %622 = vmatprep.subr.mxu0 0.0
        %623 = vmatpush1.msra.mxu0 0.0
        %624 = vmatprep.subr.mxu0 0.0
        %625 = vmatpush1.msra.mxu0 0.0
        %626 = vmatprep.subr.mxu0 0.0
        %627 = vmatpush1.msra.mxu0 0.0
        %628 = vmatprep.subr.mxu0 0.0
        %629 = vmatpush1.msra.mxu0 0.0
        %630 = vmatprep.subr.mxu0 0.0
        %631 = vmatpush1.msra.mxu0 0.0
        %632 = vmatprep.subr.mxu0 0.0
        %633 = vmatpush1.msra.mxu0 0.0
        %634 = vmatprep.subr.mxu0 0.0
        %635 = vmatpush1.msra.mxu0 0.0
        %636 = vmatprep.subr.mxu0 0.0
        %637 = vmatpush1.msra.mxu0 0.0
        %638 = vmatprep.mubr.f32.mxu0 0.0
        %639 = vmatmul.mubr.f32.gmra.mrb[0].mxu0 %v246
        %v640 = vpop.f32.mrb[0].mxu0
        %v641 = vadd.f32 0.0, %v640
        %v642 = vpop.f32.mrb[0].mxu0
        %643 = vmatprep.mubr.f32.mxu0 0.0
        %644 = vmatmul.mubr.f32.gmra.mrb[0].mxu0 %v249
        %v645 = vpop.f32.mrb[0].mxu0
        %v646 = vadd.f32 0.0, %v645
        %v647 = vpop.f32.mrb[0].mxu0
        %648 = vdwg.mxu0
        %v650 = vsel %vm244, %v641, 0
        %v653 = vsel %vm244, %v646, 0
        %655 = vmatprep.subr.mxu0 0.0
        %656 = vmatpush1.msra.mxu0 %v224
        %657 = vmatprep.subr.mxu0 0.0
        %658 = vmatpush1.msra.mxu0 %v225
        %659 = vmatprep.subr.mxu0 0.0
        %660 = vmatpush1.msra.mxu0 0.0
        %661 = vmatprep.subr.mxu0 0.0
        %662 = vmatpush1.msra.mxu0 0.0
        %663 = vmatprep.subr.mxu0 0.0
        %664 = vmatpush1.msra.mxu0 0.0
        %665 = vmatprep.subr.mxu0 0.0
        %666 = vmatpush1.msra.mxu0 0.0
        %667 = vmatprep.subr.mxu0 0.0
        %668 = vmatpush1.msra.mxu0 0.0
        %669 = vmatprep.subr.mxu0 0.0
        %670 = vmatpush1.msra.mxu0 0.0
        %671 = vmatprep.subr.mxu0 0.0
        %672 = vmatpush1.msra.mxu0 0.0
        %673 = vmatprep.subr.mxu0 0.0
        %674 = vmatpush1.msra.mxu0 0.0
        %675 = vmatprep.subr.mxu0 0.0
        %676 = vmatpush1.msra.mxu0 0.0
        %677 = vmatprep.subr.mxu0 0.0
        %678 = vmatpush1.msra.mxu0 0.0
        %679 = vmatprep.subr.mxu0 0.0
        %680 = vmatpush1.msra.mxu0 0.0
        %681 = vmatprep.subr.mxu0 0.0
        %682 = vmatpush1.msra.mxu0 0.0
        %683 = vmatprep.subr.mxu0 0.0
        %684 = vmatpush1.msra.mxu0 0.0
        %685 = vmatprep.subr.mxu0 0.0
        %686 = vmatpush1.msra.mxu0 0.0
        %687 = vmatprep.subr.mxu0 0.0
        %688 = vmatpush1.msra.mxu0 0.0
        %689 = vmatprep.subr.mxu0 0.0
        %690 = vmatpush1.msra.mxu0 0.0
        %691 = vmatprep.subr.mxu0 0.0
        %692 = vmatpush1.msra.mxu0 0.0
        %693 = vmatprep.subr.mxu0 0.0
        %694 = vmatpush1.msra.mxu0 0.0
        %695 = vmatprep.subr.mxu0 0.0
        %696 = vmatpush1.msra.mxu0 0.0
        %697 = vmatprep.subr.mxu0 0.0
        %698 = vmatpush1.msra.mxu0 0.0
        %699 = vmatprep.subr.mxu0 0.0
        %700 = vmatpush1.msra.mxu0 0.0
        %701 = vmatprep.subr.mxu0 0.0
        %702 = vmatpush1.msra.mxu0 0.0
        %703 = vmatprep.subr.mxu0 0.0
        %704 = vmatpush1.msra.mxu0 0.0
        %705 = vmatprep.subr.mxu0 0.0
        %706 = vmatpush1.msra.mxu0 0.0
        %707 = vmatprep.subr.mxu0 0.0
        %708 = vmatpush1.msra.mxu0 0.0
        %709 = vmatprep.subr.mxu0 0.0
        %710 = vmatpush1.msra.mxu0 0.0
        %711 = vmatprep.subr.mxu0 0.0
        %712 = vmatpush1.msra.mxu0 0.0
        %713 = vmatprep.subr.mxu0 0.0
        %714 = vmatpush1.msra.mxu0 0.0
        %715 = vmatprep.subr.mxu0 0.0
        %716 = vmatpush1.msra.mxu0 0.0
        %717 = vmatprep.subr.mxu0 0.0
        %718 = vmatpush1.msra.mxu0 0.0
        %719 = vmatprep.mubr.f32.mxu0 0.0
        %720 = vmatmul.mubr.f32.gmra.mrb[0].mxu0 %v650
        %v721 = vpop.f32.mrb[0].mxu0
        %v722 = vadd.f32 0.0, %v721
        %v723 = vpop.f32.mrb[0].mxu0
        %724 = vmatprep.mubr.f32.mxu0 0.0
        %725 = vmatmul.mubr.f32.gmra.mrb[0].mxu0 %v653
        %v726 = vpop.f32.mrb[0].mxu0
        %v727 = vadd.f32 0.0, %v726
        %v728 = vpop.f32.mrb[0].mxu0
        %729 = vdwg.mxu0
        %s730 = scalar_lea.vmem %s192, 32 [#allocation7]
        %731 = vst.msk [vmem:[%s730] sm:$0xff] %vm244, %v722
        %732 = vst.msk [vmem:[%s730 + $0x8] sm:$0xff] %vm244, %v727
        %s733 = scalar_lea.vmem %s171, 48 [#allocation6]
        %v734 = vld [vmem:[%s733] sm:$0xff]
        %v735 = vld [vmem:[%s733 + $0x8] sm:$0xff]
        %736 = vmatprep.subr.mxu0 0.0
        %737 = vmatpush1.msra.mxu0 %v734
        %738 = vmatprep.subr.mxu0 0.0
        %739 = vmatpush1.msra.mxu0 %v735
        %740 = vmatprep.subr.mxu0 0.0
        %741 = vmatpush1.msra.mxu0 0.0
        %742 = vmatprep.subr.mxu0 0.0
        %743 = vmatpush1.msra.mxu0 0.0
        %744 = vmatprep.subr.mxu0 0.0
        %745 = vmatpush1.msra.mxu0 0.0
        %746 = vmatprep.subr.mxu0 0.0
        %747 = vmatpush1.msra.mxu0 0.0
        %748 = vmatprep.subr.mxu0 0.0
        %749 = vmatpush1.msra.mxu0 0.0
        %750 = vmatprep.subr.mxu0 0.0
        %751 = vmatpush1.msra.mxu0 0.0
        %752 = vmatprep.subr.mxu0 0.0
        %753 = vmatpush1.msra.mxu0 0.0
        %754 = vmatprep.subr.mxu0 0.0
        %755 = vmatpush1.msra.mxu0 0.0
        %756 = vmatprep.subr.mxu0 0.0
        %757 = vmatpush1.msra.mxu0 0.0
        %758 = vmatprep.subr.mxu0 0.0
        %759 = vmatpush1.msra.mxu0 0.0
        %760 = vmatprep.subr.mxu0 0.0
        %761 = vmatpush1.msra.mxu0 0.0
        %762 = vmatprep.subr.mxu0 0.0
        %763 = vmatpush1.msra.mxu0 0.0
        %764 = vmatprep.subr.mxu0 0.0
        %765 = vmatpush1.msra.mxu0 0.0
        %766 = vmatprep.subr.mxu0 0.0
        %767 = vmatpush1.msra.mxu0 0.0
        %768 = vmatprep.subr.mxu0 0.0
        %769 = vmatpush1.msra.mxu0 0.0
        %770 = vmatprep.subr.mxu0 0.0
        %771 = vmatpush1.msra.mxu0 0.0
        %772 = vmatprep.subr.mxu0 0.0
        %773 = vmatpush1.msra.mxu0 0.0
        %774 = vmatprep.subr.mxu0 0.0
        %775 = vmatpush1.msra.mxu0 0.0
        %776 = vmatprep.subr.mxu0 0.0
        %777 = vmatpush1.msra.mxu0 0.0
        %778 = vmatprep.subr.mxu0 0.0
        %779 = vmatpush1.msra.mxu0 0.0
        %780 = vmatprep.subr.mxu0 0.0
        %781 = vmatpush1.msra.mxu0 0.0
        %782 = vmatprep.subr.mxu0 0.0
        %783 = vmatpush1.msra.mxu0 0.0
        %784 = vmatprep.subr.mxu0 0.0
        %785 = vmatpush1.msra.mxu0 0.0
        %786 = vmatprep.subr.mxu0 0.0
        %787 = vmatpush1.msra.mxu0 0.0
        %788 = vmatprep.subr.mxu0 0.0
        %789 = vmatpush1.msra.mxu0 0.0
        %790 = vmatprep.subr.mxu0 0.0
        %791 = vmatpush1.msra.mxu0 0.0
        %792 = vmatprep.subr.mxu0 0.0
        %793 = vmatpush1.msra.mxu0 0.0
        %794 = vmatprep.subr.mxu0 0.0
        %795 = vmatpush1.msra.mxu0 0.0
        %796 = vmatprep.subr.mxu0 0.0
        %797 = vmatpush1.msra.mxu0 0.0
        %798 = vmatprep.subr.mxu0 0.0
        %799 = vmatpush1.msra.mxu0 0.0
        %800 = vmatprep.mubr.f32.mxu0 0.0
        %801 = vmatmul.mubr.f32.gmra.mrb[0].mxu0 %v246
        %v802 = vpop.f32.mrb[0].mxu0
        %v803 = vadd.f32 0.0, %v802
        %v804 = vpop.f32.mrb[0].mxu0
        %805 = vmatprep.mubr.f32.mxu0 0.0
        %806 = vmatmul.mubr.f32.gmra.mrb[0].mxu0 %v249
        %v807 = vpop.f32.mrb[0].mxu0
        %v808 = vadd.f32 0.0, %v807
        %v809 = vpop.f32.mrb[0].mxu0
        %810 = vdwg.mxu0
        %v812 = vsel %vm244, %v803, 0
        %v815 = vsel %vm244, %v808, 0
        %817 = vmatprep.subr.mxu0 0.0
        %818 = vmatpush1.msra.mxu0 %v224
        %819 = vmatprep.subr.mxu0 0.0
        %820 = vmatpush1.msra.mxu0 %v225
        %821 = vmatprep.subr.mxu0 0.0
        %822 = vmatpush1.msra.mxu0 0.0
        %823 = vmatprep.subr.mxu0 0.0
        %824 = vmatpush1.msra.mxu0 0.0
        %825 = vmatprep.subr.mxu0 0.0
        %826 = vmatpush1.msra.mxu0 0.0
        %827 = vmatprep.subr.mxu0 0.0
        %828 = vmatpush1.msra.mxu0 0.0
        %829 = vmatprep.subr.mxu0 0.0
        %830 = vmatpush1.msra.mxu0 0.0
        %831 = vmatprep.subr.mxu0 0.0
        %832 = vmatpush1.msra.mxu0 0.0
        %833 = vmatprep.subr.mxu0 0.0
        %834 = vmatpush1.msra.mxu0 0.0
        %835 = vmatprep.subr.mxu0 0.0
        %836 = vmatpush1.msra.mxu0 0.0
        %837 = vmatprep.subr.mxu0 0.0
        %838 = vmatpush1.msra.mxu0 0.0
        %839 = vmatprep.subr.mxu0 0.0
        %840 = vmatpush1.msra.mxu0 0.0
        %841 = vmatprep.subr.mxu0 0.0
        %842 = vmatpush1.msra.mxu0 0.0
        %843 = vmatprep.subr.mxu0 0.0
        %844 = vmatpush1.msra.mxu0 0.0
        %845 = vmatprep.subr.mxu0 0.0
        %846 = vmatpush1.msra.mxu0 0.0
        %847 = vmatprep.subr.mxu0 0.0
        %848 = vmatpush1.msra.mxu0 0.0
        %849 = vmatprep.subr.mxu0 0.0
        %850 = vmatpush1.msra.mxu0 0.0
        %851 = vmatprep.subr.mxu0 0.0
        %852 = vmatpush1.msra.mxu0 0.0
        %853 = vmatprep.subr.mxu0 0.0
        %854 = vmatpush1.msra.mxu0 0.0
        %855 = vmatprep.subr.mxu0 0.0
        %856 = vmatpush1.msra.mxu0 0.0
        %857 = vmatprep.subr.mxu0 0.0
        %858 = vmatpush1.msra.mxu0 0.0
        %859 = vmatprep.subr.mxu0 0.0
        %860 = vmatpush1.msra.mxu0 0.0
        %861 = vmatprep.subr.mxu0 0.0
        %862 = vmatpush1.msra.mxu0 0.0
        %863 = vmatprep.subr.mxu0 0.0
        %864 = vmatpush1.msra.mxu0 0.0
        %865 = vmatprep.subr.mxu0 0.0
        %866 = vmatpush1.msra.mxu0 0.0
        %867 = vmatprep.subr.mxu0 0.0
        %868 = vmatpush1.msra.mxu0 0.0
        %869 = vmatprep.subr.mxu0 0.0
        %870 = vmatpush1.msra.mxu0 0.0
        %871 = vmatprep.subr.mxu0 0.0
        %872 = vmatpush1.msra.mxu0 0.0
        %873 = vmatprep.subr.mxu0 0.0
        %874 = vmatpush1.msra.mxu0 0.0
        %875 = vmatprep.subr.mxu0 0.0
        %876 = vmatpush1.msra.mxu0 0.0
        %877 = vmatprep.subr.mxu0 0.0
        %878 = vmatpush1.msra.mxu0 0.0
        %879 = vmatprep.subr.mxu0 0.0
        %880 = vmatpush1.msra.mxu0 0.0
        %881 = vmatprep.mubr.f32.mxu0 0.0
        %882 = vmatmul.mubr.f32.gmra.mrb[0].mxu0 %v812
        %v883 = vpop.f32.mrb[0].mxu0
        %v884 = vadd.f32 0.0, %v883
        %v885 = vpop.f32.mrb[0].mxu0
        %886 = vmatprep.mubr.f32.mxu0 0.0
        %887 = vmatmul.mubr.f32.gmra.mrb[0].mxu0 %v815
        %v888 = vpop.f32.mrb[0].mxu0
        %v889 = vadd.f32 0.0, %v888
        %v890 = vpop.f32.mrb[0].mxu0
        %891 = vdwg.mxu0
        %s892 = scalar_lea.vmem %s192, 48 [#allocation7]
        %893 = vst.msk [vmem:[%s892] sm:$0xff] %vm244, %v884
        %894 = vst.msk [vmem:[%s892 + $0x8] sm:$0xff] %vm244, %v889
        %s895 = sand.u32 %s91, 1
        %s896 = scalar_lea.sflag [#allocation4], %s895
        %s897 = sand.u32 %s91, 1
        %s898 = smul.addr %s897, 64
        %s899 = scalar_lea.vmem [#allocation7], %s898
        // Predicated region
        $region37: #{tpu_custom_call.1} parent=27 // pred_check
          %p900 = pneg %p101
        $region38: #{tpu_custom_call.1} parent=27 // pred_check_branch
          %902 = sbr.rel (%p900) target = $region40
        $region39: #{tpu_custom_call.1} parent=27 // pred_region
          %s903 = smul.u32 4, %s25
          %s905 = ssub.s32 1024, 1024
          %906 = vsyncadd %s896, %s905
          %s907 = smul.addr %s903, 2
          %s908 = smul.addr %s24, 8
          %s909 = sadd.s32 %s907, %s908
          %s910 = smul.addr %s909, 128
          %s911 = scalar_lea.hbm %s2, %s910
          %s912 = sshll.u32 %s899, 4
          %s913 = int_to_ptr.vmem [resolvable:$true] %s912
          %918 = dma.vmem_to_hbm [thread:$0]  %s913, 1024, %s911, %s896, 128, 128, 8
        $region40: #{tpu_custom_call.1} parent=27 // pred_fallthru
          _
      $region28: #{tpu_custom_call.1} parent=5 // pred_fallthru
        _
      %p919 = scmp.le.s32.totalorder 2, %s15
      // Predicated region
      $region41: #{tpu_custom_call.1} parent=5 // pred_check
        %p920 = pneg %p919
      $region42: #{tpu_custom_call.1} parent=5 // pred_check_branch
        %922 = sbr.rel (%p920) target = $region44
      $region43: #{tpu_custom_call.1} parent=5 // pred_region
        %s923 = ssub.s32 %s15, 2
        // Predicated region
        $region45: #{tpu_custom_call.1} parent=43 // pred_check
          %p924 = pneg %p107
        $region46: #{tpu_custom_call.1} parent=43 // pred_check_branch
          %926 = sbr.rel (%p924) target = $region48
        $region47: #{tpu_custom_call.1} parent=43 // pred_region
          %s927 = sand.u32 %s92, 1
          %s928 = scalar_lea.sflag [#allocation4], %s927
          %s929 = sand.u32 %s92, 1
          %s930 = smul.addr %s929, 64
          %s931 = scalar_lea.vmem [#allocation7], %s930
          %932 = dma.done %s928, 1024
        $region48: #{tpu_custom_call.1} parent=43 // pred_fallthru
          _
      $region44: #{tpu_custom_call.1} parent=5 // pred_fallthru
        _
    $region6: #{tpu_custom_call.1} parent=1 // loop_footer
      %s19 = sadd.s32 1, %s15
    $region7: #{tpu_custom_call.1} parent=1 // loop_footer_branch
      %14 = sbr.rel target = $region3
    $region8: #{tpu_custom_call.1} parent=1 // loop_exit
      _
    %933 = vsyncpa [#allocation3], 1
    %s934 = scalar_lea.sflag [#allocation3], 1
    %935 = vsyncpa %s934, 1
    %936 = vsyncpa [#allocation4], 1
    %s937 = scalar_lea.sflag [#allocation4], 1
    %938 = vsyncpa %s937, 1
    %939 = vsyncpa [#allocation5], 1
    %s940 = scalar_lea.sflag [#allocation5], 1
    %941 = vsyncpa %s940, 1

</llo_original>
